<compile_context>
chip_gen: v7x
topology: tpu7x:2x2x1
jax: 0.10.0
libtpu: 0.0.40
codegen_flags: <defaults>
</compile_context>

<pallas_src>
import functools

import jax
import jax.numpy as jnp
from jax.experimental import pallas as pl
from jax.experimental.pallas import tpu as pltpu

NUM_EDGE_CLASSES = 7
IGNORE_INDEX = -100
# From GraphLoss.__init__: weight = torch.ones(7) * 10; weight[0] = 1
DEFAULT_EDGE_WEIGHTS = (1.0,) + (10.0,) * (NUM_EDGE_CLASSES - 1)


def _round_up(x, m):
    return (x + m - 1) // m * m


# ----------------------------------------------------------------------------
# Kernel 1: masked L1 loss over coordinates (lane-dense [rows, 128] layout).
# ----------------------------------------------------------------------------
def _coords_loss_kernel(pred_ref, tgt_ref, out_ref):
    pred = pred_ref[...].astype(jnp.float32)
    tgt = tgt_ref[...].astype(jnp.float32)
    mask = (tgt >= 0.0).astype(jnp.float32)
    num = jnp.sum(jnp.abs(pred - tgt) * mask)
    den = jnp.sum(mask)
    # NaN when everything is padding, matching the PyTorch reference.
    out_ref[0] = num / den


def coords_loss(pred, target_coords):
    # pred: [B, L, 2]; target_coords: [B, Lmax, 2] with Lmax >= L
    B, L, D = pred.shape
    tgt = target_coords[:, :L, :]

    p = pred.reshape(-1)
    t = tgt.reshape(-1)
    n = p.shape[0]
    npad = _round_up(n, 128)
    if npad != n:
        p = jnp.pad(p, (0, npad - n))
        t = jnp.pad(t, (0, npad - n), constant_values=-1.0)  # masked out
    rows = npad // 128
    p2 = p.reshape(rows, 128)
    t2 = t.reshape(rows, 128)

    out = pl.pallas_call(
        _coords_loss_kernel,
        out_shape=jax.ShapeDtypeStruct((1,), jnp.float32),
        in_specs=[pl.BlockSpec(memory_space=pltpu.MemorySpace.VMEM)] * 2,
        out_specs=pl.BlockSpec(memory_space=pltpu.MemorySpace.SMEM),
    )(p2, t2)
    return out[0]


# ----------------------------------------------------------------------------
# Kernel 2: weighted cross-entropy with ignore_index, tiled over tokens.
#   logits_ref : (1, C, r_chunk, 128)   one batch, all classes, one token chunk
#   labels_ref : (1, r_chunk, 128)      int32 labels for the same chunk
#   num_ref    : (1, 8, 128)  resident per-batch partial  sum w[y]*(-logp[y])
#   den_ref    : (1, 8, 128)  resident per-batch partial  sum w[y]
# Class weights are compile-time Python floats (module constants).
# ----------------------------------------------------------------------------
def _edges_loss_kernel(logits_ref, labels_ref, num_ref, den_ref, *, weights):
    t = pl.program_id(1)

    @pl.when(t == 0)
    def _init():
        num_ref[...] = jnp.zeros_like(num_ref)
        den_ref[...] = jnp.zeros_like(den_ref)

    num_classes = logits_ref.shape[1]
    r_chunk = logits_ref.shape[2]
    num_sub = r_chunk // 8

    num_acc = jnp.zeros((8, 128), jnp.float32)
    den_acc = jnp.zeros((8, 128), jnp.float32)

    # Static (unrolled) loop over (8, 128) sub-tiles keeps vreg pressure low
    # (~a dozen live vregs) while the DMA block per grid step stays large.
    for s in range(num_sub):
        row = s * 8
        lab = labels_ref[0, row:row + 8, :]  # (8, 128) int32
        xs = [
            logits_ref[0, c, row:row + 8, :].astype(jnp.float32)
            for c in range(num_classes)
        ]

        # max over classes (elementwise, no cross-lane work)
        m = xs[0]
        for c in range(1, num_classes):
            m = jnp.maximum(m, xs[c])

        ssum = jnp.zeros((8, 128), jnp.float32)
        picked = jnp.zeros((8, 128), jnp.float32)
        w_lab = jnp.zeros((8, 128), jnp.float32)
        for c in range(num_classes):
            ssum = ssum + jnp.exp(xs[c] - m)          # EUP
            sel = lab == c
            picked = jnp.where(sel, xs[c], picked)
            w_lab = jnp.where(sel, jnp.float32(weights[c]), w_lab)

        lse = jnp.log(ssum) + m
        # ignore_index (-100) and padded tokens never match any class:
        # w_lab stays 0 there, so they contribute nothing to num or den.
        num_acc = num_acc + (lse - picked) * w_lab
        den_acc = den_acc + w_lab

    num_ref[0, :, :] = num_ref[0, :, :] + num_acc
    den_ref[0, :, :] = den_ref[0, :, :] + den_acc


def edges_loss(pred_logits, target_edges, class_weight=DEFAULT_EDGE_WEIGHTS,
               *, chunk_rows=128):
    # pred_logits: [B, C, L, L] (NCHW, any float dtype); target_edges: [B, Lmax, Lmax] int
    # class_weight must be static Python numbers (fixed constants in
    # GraphLoss.__init__).
    weights = tuple(float(w) for w in class_weight)
    B, C, L, _ = pred_logits.shape
    assert len(weights) == C

    tokens = L * L
    lane_rows = _round_up(tokens, 128) // 128           # token rows of 128 lanes
    chunk_rows = _round_up(chunk_rows, 8)
    r_chunk = min(chunk_rows, _round_up(lane_rows, 8))   # sublane rows per grid step
    R_total = _round_up(lane_rows, r_chunk)
    npad = R_total * 128
    num_chunks = R_total // r_chunk

    # NCHW is already the right layout: classes stay on a leading dim, tokens
    # get split into dense (sublane, lane) tiles.  No transpose, no upcast.
    logits = pred_logits.reshape(B, C, tokens)
    labels = target_edges[:, :L, :L].reshape(B, tokens).astype(jnp.int32)
    if npad != tokens:
        logits = jnp.pad(logits, ((0, 0), (0, 0), (0, npad - tokens)))
        labels = jnp.pad(labels, ((0, 0), (0, npad - tokens)),
                         constant_values=IGNORE_INDEX)
    logits = logits.reshape(B, C, R_total, 128)
    labels = labels.reshape(B, R_total, 128)

    acc_shape = jax.ShapeDtypeStruct((B, 8, 128), jnp.float32)
    acc_spec = pl.BlockSpec((1, 8, 128), lambda b, t: (b, 0, 0))

    cost = pl.CostEstimate(
        flops=12 * B * C * npad,
        transcendentals=B * npad * (C + 1),
        bytes_accessed=int(logits.size) * logits.dtype.itemsize
        + int(labels.size) * 4 + 2 * B * 8 * 128 * 4,
    )

    kernel = functools.partial(_edges_loss_kernel, weights=weights)
    num_out, den_out = pl.pallas_call(
        kernel,
        grid=(B, num_chunks),
        in_specs=[
            pl.BlockSpec((1, C, r_chunk, 128), lambda b, t: (b, 0, t, 0)),
            pl.BlockSpec((1, r_chunk, 128), lambda b, t: (b, t, 0)),
        ],
        out_specs=(acc_spec, acc_spec),
        out_shape=(acc_shape, acc_shape),
        compiler_params=pltpu.CompilerParams(
            dimension_semantics=("parallel", "arbitrary")),
        cost_estimate=cost,
    )(logits, labels)

    # Final reduction + single divide in the wrapper (partials must be summed
    # separately; dividing per block would be wrong).
    return jnp.sum(num_out) / jnp.sum(den_out)


def graph_loss(outputs, targets, class_weight=DEFAULT_EDGE_WEIGHTS):
    results = {}
    if "coords" in outputs:
        results["coords"] = coords_loss(outputs["coords"], targets["coords"])
    if "edges" in outputs:
        results["edges"] = edges_loss(outputs["edges"], targets["edges"], class_weight)
    return results


# ----------------------------------------------------------------------------
# Pure-JAX reference (mirrors the PyTorch module) for a correctness check.
# ----------------------------------------------------------------------------
def _reference_losses(outputs, targets, weights):
    pred = outputs["coords"]
    L = pred.shape[1]
    tgt = targets["coords"][:, :L]
    mask = (tgt >= 0).astype(jnp.float32)
    coords = jnp.sum(jnp.abs(pred - tgt) * mask) / jnp.sum(mask)

    logits = outputs["edges"]
    Lh = logits.shape[-1]
    lab = targets["edges"][:, :Lh, :Lh].reshape(-1)
    x = jnp.transpose(logits, (0, 2, 3, 1)).reshape(-1, logits.shape[1])
    valid = lab != IGNORE_INDEX
    safe = jnp.where(valid, lab, 0)
    logp = jax.nn.log_softmax(x.astype(jnp.float32), axis=-1)
    picked = jnp.take_along_axis(logp, safe[:, None], axis=-1)[:, 0]
    w = jnp.asarray(weights, jnp.float32)[safe]
    num = jnp.sum(jnp.where(valid, -picked * w, 0.0))
    den = jnp.sum(jnp.where(valid, w, 0.0))
    return coords, num / den


if __name__ == "__main__":
    key = jax.random.PRNGKey(0)
    k1, k2, k3, k4 = jax.random.split(key, 4)

    B, L, Lmax = 2, 8, 12

    # Coordinate predictions / targets; last 2 tokens per batch are "padding" (-1).
    pred_coords = jax.random.uniform(k1, (B, L, 2), jnp.float32)
    tgt_coords = jax.random.uniform(k2, (B, Lmax, 2), jnp.float32)
    pad_mask = (jnp.arange(Lmax) >= L - 2)[None, :, None]
    tgt_coords = jnp.where(pad_mask, -1.0, tgt_coords)

    # Edge logits (NCHW) / integer targets with a row of ignore_index entries.
    pred_edges = jax.random.normal(k3, (B, NUM_EDGE_CLASSES, L, L), jnp.float32)
    tgt_edges = jax.random.randint(k4, (B, Lmax, Lmax), 0, NUM_EDGE_CLASSES, jnp.int32)
    ignore_row = (jnp.arange(Lmax) == L - 1)[None, :, None]
    tgt_edges = jnp.where(ignore_row, IGNORE_INDEX, tgt_edges)

    outputs = {"coords": pred_coords, "edges": pred_edges}
    targets = {"coords": tgt_coords, "edges": tgt_edges}

    results = graph_loss(outputs, targets, DEFAULT_EDGE_WEIGHTS)
    results = jax.tree_util.tree_map(jax.block_until_ready, results)

    ref_coords, ref_edges = _reference_losses(outputs, targets, DEFAULT_EDGE_WEIGHTS)

    assert jnp.isfinite(results["coords"]).item()
    assert jnp.isfinite(results["edges"]).item()
    assert jnp.allclose(results["coords"], ref_coords, rtol=1e-3, atol=1e-3), (
        results["coords"], ref_coords)
    assert jnp.allclose(results["edges"], ref_edges, rtol=1e-3, atol=1e-3), (
        results["edges"], ref_edges)
    print("KERNEL_OK")
</pallas_src>

<mosaic_0001>
module attributes {stable_mosaic.version = 11 : i64} {
  func.func @_coords_loss_kernel(%arg0: memref<1x128xf32, #tpu.memory_space<vmem>>, %arg1: memref<1x128xf32, #tpu.memory_space<vmem>>, %arg2: memref<1xf32, #tpu.memory_space<smem>>) attributes {dimension_semantics = [], scalar_prefetch = 0 : i64, scratch_operands = 0 : i64, tpu.core_type = #tpu.core_type<tc>} {
    %c0 = arith.constant 0 : index
    %c0_0 = arith.constant 0 : index
    %0 = vector.load %arg0[%c0, %c0_0] : memref<1x128xf32, #tpu.memory_space<vmem>>, vector<1x128xf32>
    %c0_1 = arith.constant 0 : index
    %c0_2 = arith.constant 0 : index
    %1 = vector.load %arg1[%c0_1, %c0_2] : memref<1x128xf32, #tpu.memory_space<vmem>>, vector<1x128xf32>
    %cst = arith.constant 0.000000e+00 : f32
    %2 = vector.broadcast %cst : f32 to vector<1x128xf32>
    %3 = arith.cmpf oge, %1, %2 : vector<1x128xf32>
    %4 = arith.extui %3 : vector<1x128xi1> to vector<1x128xi32>
    %5 = arith.sitofp %4 : vector<1x128xi32> to vector<1x128xf32>
    %6 = arith.subf %0, %1 : vector<1x128xf32>
    %7 = math.absf %6 : vector<1x128xf32>
    %8 = arith.mulf %7, %5 : vector<1x128xf32>
    %9 = vector.shape_cast %8 : vector<1x128xf32> to vector<1x1x128xf32>
    %cst_3 = arith.constant dense<0.000000e+00> : vector<1xf32>
    %10 = vector.multi_reduction <add>, %9, %cst_3 [1, 2] : vector<1x1x128xf32> to vector<1xf32>
    %11 = vector.shape_cast %10 : vector<1xf32> to vector<1x1x1xf32>
    %12 = vector.extract %11[0, 0, 0] : f32 from vector<1x1x1xf32>
    %13 = vector.shape_cast %5 : vector<1x128xf32> to vector<1x1x128xf32>
    %cst_4 = arith.constant dense<0.000000e+00> : vector<1xf32>
    %14 = vector.multi_reduction <add>, %13, %cst_4 [1, 2] : vector<1x1x128xf32> to vector<1xf32>
    %15 = vector.shape_cast %14 : vector<1xf32> to vector<1x1x1xf32>
    %16 = vector.extract %15[0, 0, 0] : f32 from vector<1x1x1xf32>
    %17 = arith.divf %12, %16 : f32
    %c0_5 = arith.constant 0 : index
    %18 = memref.load %arg2[%c0_5] : memref<1xf32, #tpu.memory_space<smem>>
    memref.store %17, %arg2[%c0_5] : memref<1xf32, #tpu.memory_space<smem>>
    return
  }
}

</mosaic_0001>

<llo_original>
// kernel: tpu_custom_call.1
$region0: #{tpu_custom_call.1}
  #allocation0 [shape = 'u32[]', space=smem, size = 0x4, offset = 0x4, fixed_abs, tag = 'smem constant byte address 0x4 - core index']
  #allocation1 [shape = 'u32[144,128]{1,0:T(1,128)}', space=vmem, size = 0x12000, scoped, tag = 'internal scratch']
  %s0 = inlined_call_operand.hbm [shape: f32[1,128], index: 0, kind: input, shape index: {}]
  %s1 = inlined_call_operand.vmem [shape: f32[1,128], index: 1, kind: input, shape index: {}]
  %s2 = inlined_call_operand.hbm [shape: f32[1], index: 2, kind: output, shape index: {}]
  %s3 = sld [smem:[#allocation0]]
  $region22: #{tpu_custom_call.1} parent=0
    _
  %s5 = ssub.s32 1, %s3
  %s6 = scalar_select 0, %s5, %s3
  $region1: #{tpu_custom_call.1} parent=0
    #allocation2 [shape = 'u8[512]{0}', space=vmem, size = 0x400, scoped, tag = 'input window, operand 0, single buffered']
    #allocation3 [shape = 's32[1]{0}', space=sflag, size = 0x4, scoped, tag = 'scoped memory for tpu_custom_call.1']
    #allocation4 [shape = 's32[1]{0}', space=sflag, size = 0x4, scoped, tag = 'scoped memory for tpu_custom_call.1']
    #allocation5 [shape = 'u8[512]{0}', space=smem, size = 0x200, scoped, tag = 'output window, operand 0, single buffered']
    %7 = vsyncpa [#allocation3], 0
    %8 = vsyncpa [#allocation4], 0
    // Predicated region
    $region2: #{tpu_custom_call.1} parent=1 // pred_check
      _
    $region3: #{tpu_custom_call.1} parent=1 // pred_check_branch
      %10 = sbr.rel (0) target = $region5
    $region4: #{tpu_custom_call.1} parent=1 // pred_region
      %s12 = ssub.s32 16, 16
      %13 = vsyncadd [#allocation3], %s12
      %s15 = sshll.u32 [#allocation2], 4
      %s16 = int_to_ptr.vmem [resolvable:$true] %s15
      %18 = dma.hbm_to_vmem [thread:$0]  %s0, 16, %s16, [#allocation3]
    $region5: #{tpu_custom_call.1} parent=1 // pred_fallthru
      _
    // Predicated region
    $region6: #{tpu_custom_call.1} parent=1 // pred_check
      _
    $region7: #{tpu_custom_call.1} parent=1 // pred_check_branch
      %20 = sbr.rel (0) target = $region9
    $region8: #{tpu_custom_call.1} parent=1 // pred_region
      _
    $region9: #{tpu_custom_call.1} parent=1 // pred_fallthru
      _
    // Predicated region
    $region10: #{tpu_custom_call.1} parent=1 // pred_check
      _
    $region11: #{tpu_custom_call.1} parent=1 // pred_check_branch
      %22 = sbr.rel (0) target = $region13
    $region12: #{tpu_custom_call.1} parent=1 // pred_region
      %23 = dma.done [#allocation3], 16
    $region13: #{tpu_custom_call.1} parent=1 // pred_fallthru
      _
    %v24 = vld [vmem:[#allocation2] sm:$0x1]
    %v25 = vld [vmem:[%s1] sm:$0x1]
    %vm26 = vcmp.ge.f32.partialorder %v25, 0.0
    %v27 = vsel %vm26, 1, 0
    %v28 = vcvt.s32.f32 %v27
    %v29 = vsub.f32 %v24, %v25
    %v30 = vand.u32 2147483647, %v29
    %v31 = vmul.f32 %v30, %v28
    %vm32 = vcmask 1040384
    %v33 = vsel %vm32, %v31, 0.0
    %34 = vadd.xlane.f32.xlu0 %v33
    %v35 = vpop.xlane.xlu0 %34
    %v36 = vrot.slane %v35, 4
    %v37 = vadd.f32 %v35, %v36
    %v38 = vrot.slane %v37, 2
    %v39 = vadd.f32 %v37, %v38
    %v40 = vrot.slane %v39, 1
    %v41 = vadd.f32 %v39, %v40
    %s42 = vtos %v41
    %v43 = vsel %vm32, %v28, 0.0
    %44 = vadd.xlane.f32.xlu0 %v43
    %v45 = vpop.xlane.xlu0 %44
    %v46 = vrot.slane %v45, 4
    %v47 = vadd.f32 %v45, %v46
    %v48 = vrot.slane %v47, 2
    %v49 = vadd.f32 %v47, %v48
    %v50 = vrot.slane %v49, 1
    %v51 = vadd.f32 %v49, %v50
    %s52 = vtos %v51
    %v53 = vstv %s52
    %v54 = vrcp.pop %v53
    %s55 = vtos %v54
    %s56 = smul.f32 %s42, %s55
    %s57 = scalar_lea.smem [#allocation5], 0
    %58 = sst [smem:[%s57]] %s56
    // Predicated region
    $region14: #{tpu_custom_call.1} parent=1 // pred_check
      _
    $region15: #{tpu_custom_call.1} parent=1 // pred_check_branch
      %60 = sbr.rel (0) target = $region17
    $region16: #{tpu_custom_call.1} parent=1 // pred_region
      %s62 = ssub.s32 16, 16
      %63 = vsyncadd [#allocation4], %s62
      %66 = dma.smem_to_hbm [#allocation5], 16, %s2, [#allocation4]
    $region17: #{tpu_custom_call.1} parent=1 // pred_fallthru
      _
    // Predicated region
    $region18: #{tpu_custom_call.1} parent=1 // pred_check
      _
    $region19: #{tpu_custom_call.1} parent=1 // pred_check_branch
      %68 = sbr.rel (0) target = $region21
    $region20: #{tpu_custom_call.1} parent=1 // pred_region
      %69 = dma.done [#allocation4], 16
    $region21: #{tpu_custom_call.1} parent=1 // pred_fallthru
      _
    %70 = sfence
    %71 = vsyncpa [#allocation3], 1
    %72 = vsyncpa [#allocation4], 1

</llo_original>
